<compile_context>
chip_gen: v7x
topology: tpu7x:2x2x1
jax: 0.10.0
libtpu: 0.0.40
codegen_flags: <defaults>
</compile_context>

<pallas_src>
import functools

import jax
import jax.numpy as jnp
from jax import lax
from jax.experimental import pallas as pl
from jax.experimental.pallas import tpu as pltpu


# ------------------------------ small helpers -------------------------------

def _round_up(x, m):
    return (x + m - 1) // m * m


def _vmem_limit_bytes():
    """Scoped-VMEM limit asked from Mosaic: ~3/4 of physical, generation-aware."""
    try:
        info = pltpu.get_tpu_info()
        cap = int(getattr(info, "vmem_capacity_bytes", 64 << 20))
    except Exception:  # interpret mode / older runtimes
        cap = 64 << 20
    cap = max(cap, 16 << 20)
    return int(cap * 3 // 4)


def _epilogue_dtype(x_dtype):
    """bf16/f16 epilogue packs 2x on v6e/v7x; v5e has no bf16 VPU path -> f32."""
    dt = jnp.dtype(x_dtype)
    if dt not in (jnp.dtype(jnp.bfloat16), jnp.dtype(jnp.float16)):
        return jnp.dtype(jnp.float32)
    try:
        kind = jax.devices()[0].device_kind.lower()
    except Exception:
        kind = ""
    if "v5 lite" in kind or "v5e" in kind or "v5lite" in kind:
        return jnp.dtype(jnp.float32)
    return dt


def _row_block(rows, sub, max_rows_per_block):
    """Sublane-tile-aligned row block; prefer >= 4 blocks (2 per v7x core)."""
    if rows <= sub:
        return rows                      # full-extent sublane block (always legal)
    target_blocks = 4 if rows >= 4 * sub else 2
    tr = _round_up(pl.cdiv(rows, target_blocks), sub)
    tr_cap = max(sub, (max_rows_per_block // sub) * sub)
    return max(sub, min(tr, tr_cap))


# ------------------------------ fused kernel --------------------------------

def _adain_fused_kernel(x_ref, sb_ref, o_ref, *, eps, inv_n, valid_lanes, lanes,
                        ep_dtype):
    # x_ref: (tr, lanes)   sb_ref: (tr, 2) = [gamma, beta] (f32)   o_ref: (tr, lanes)
    x = x_ref[...].astype(jnp.float32)
    if valid_lanes == lanes:
        mean = jnp.sum(x, axis=-1, keepdims=True) * inv_n
        cent = x - mean
        var = jnp.sum(cent * cent, axis=-1, keepdims=True) * inv_n   # biased var
    else:
        # Lanes beyond `valid_lanes` are wrapper zero-padding: mask them out of
        # both sums (centered form stays numerically robust).
        mask = lax.broadcasted_iota(jnp.int32, x.shape, 1) < valid_lanes
        mean = jnp.sum(jnp.where(mask, x, 0.0), axis=-1, keepdims=True) * inv_n
        cent = jnp.where(mask, x - mean, 0.0)
        var = jnp.sum(cent * cent, axis=-1, keepdims=True) * inv_n
    inv = lax.rsqrt(var + eps)                                       # EUP, f32
    gamma = sb_ref[:, 0:1]
    beta = sb_ref[:, 1:2]
    a = inv * gamma                                                  # (tr, 1)
    b = beta - mean * a                                              # fold mean in
    if ep_dtype == jnp.dtype(jnp.float32):
        y = x * a + b
    else:
        y = x_ref[...].astype(ep_dtype) * a.astype(ep_dtype) + b.astype(ep_dtype)
    o_ref[...] = y.astype(o_ref.dtype)


def _adain_fused(x_rows, sb, *, eps, hw_valid):
    rows, lanes = x_rows.shape
    itemsize = jnp.dtype(x_rows.dtype).itemsize
    sub = max(8, 32 // itemsize)
    limit = _vmem_limit_bytes()
    # Per-block footprint ~ 2x double-buffered in + 2x out (input dtype) + ~2 f32 temps.
    max_block_elems = max(sub * 128, int(limit * 0.7) // (4 * itemsize + 8))
    tr = _row_block(rows, sub, max(1, max_block_elems // lanes))
    grid = (pl.cdiv(rows, tr),)

    kernel = functools.partial(
        _adain_fused_kernel, eps=float(eps), inv_n=1.0 / float(hw_valid),
        valid_lanes=hw_valid, lanes=lanes, ep_dtype=_epilogue_dtype(x_rows.dtype))

    return pl.pallas_call(
        kernel,
        out_shape=jax.ShapeDtypeStruct((rows, lanes), x_rows.dtype),
        grid_spec=pltpu.PrefetchScalarGridSpec(
            num_scalar_prefetch=0,
            grid=grid,
            in_specs=[
                pl.BlockSpec((tr, lanes), lambda i: (i, 0)),  # activations (lane-dense)
                pl.BlockSpec((tr, 2), lambda i: (i, 0)),      # [gamma, beta] per row
            ],
            out_specs=pl.BlockSpec((tr, lanes), lambda i: (i, 0)),
        ),
        compiler_params=pltpu.CompilerParams(
            dimension_semantics=("parallel",),
            vmem_limit_bytes=limit,
        ),
        cost_estimate=pl.CostEstimate(
            flops=8 * rows * hw_valid,
            transcendentals=rows,
            bytes_accessed=2 * rows * lanes * itemsize),
    )(x_rows, sb)


# --------------------- large-H*W path: stats + apply ------------------------

def _adain_stats_kernel(x_ref, sb_ref, ab_ref, sum_ref, sq_ref, *, eps, inv_n):
    # x_ref: (tr, t_hw)   sb_ref: (tr, 2)   ab_ref: (tr, 2) f32 (resident over j)
    j = pl.program_id(1)

    @pl.when(j == 0)
    def _():
        sum_ref[...] = jnp.zeros_like(sum_ref)
        sq_ref[...] = jnp.zeros_like(sq_ref)
        ab_ref[...] = jnp.zeros_like(ab_ref)

    x = x_ref[...].astype(jnp.float32)
    # Wrapper zero-pads H*W to a multiple of t_hw, so padded lanes add 0 here.
    sum_ref[...] += jnp.sum(x, axis=-1, keepdims=True)
    sq_ref[...] += jnp.sum(x * x, axis=-1, keepdims=True)

    @pl.when(j == pl.num_programs(1) - 1)
    def _():
        mean = sum_ref[...] * inv_n
        # TODO(synk): single-pass E[x^2]-mean^2 can cancel when |mean| >> std; the
        # clamp keeps var >= 0 and activations here are O(1), so this is acceptable.
        var = jnp.maximum(sq_ref[...] * inv_n - mean * mean, 0.0)
        a = lax.rsqrt(var + eps) * sb_ref[:, 0:1]
        b = sb_ref[:, 1:2] - mean * a
        ab_ref[...] = jnp.concatenate([a, b], axis=-1)


def _adain_apply_kernel(x_ref, ab_ref, o_ref, *, ep_dtype):
    a = ab_ref[:, 0:1]
    b = ab_ref[:, 1:2]
    if ep_dtype == jnp.dtype(jnp.float32):
        y = x_ref[...].astype(jnp.float32) * a + b
    else:
        y = x_ref[...].astype(ep_dtype) * a.astype(ep_dtype) + b.astype(ep_dtype)
    o_ref[...] = y.astype(o_ref.dtype)


def _adain_chunked(x_rows, sb, *, eps, hw_valid, t_hw):
    rows, lanes = x_rows.shape            # lanes is a multiple of t_hw
    itemsize = jnp.dtype(x_rows.dtype).itemsize
    sub = max(8, 32 // itemsize)
    limit = _vmem_limit_bytes()
    tr = rows if rows <= sub else sub
    n_rb = pl.cdiv(rows, tr)
    n_ch = lanes // t_hw
    inv_n = 1.0 / float(hw_valid)

    stats = pl.pallas_call(
        functools.partial(_adain_stats_kernel, eps=float(eps), inv_n=inv_n),
        out_shape=jax.ShapeDtypeStruct((rows, 2), jnp.float32),
        grid_spec=pltpu.PrefetchScalarGridSpec(
            num_scalar_prefetch=0,
            grid=(n_rb, n_ch),
            in_specs=[
                pl.BlockSpec((tr, t_hw), lambda i, j: (i, j)),
                pl.BlockSpec((tr, 2), lambda i, j: (i, 0)),
            ],
            out_specs=pl.BlockSpec((tr, 2), lambda i, j: (i, 0)),
            scratch_shapes=[pltpu.VMEM((tr, 1), jnp.float32),
                            pltpu.VMEM((tr, 1), jnp.float32)],
        ),
        compiler_params=pltpu.CompilerParams(
            dimension_semantics=("parallel", "arbitrary"),
            vmem_limit_bytes=limit,
        ),
        cost_estimate=pl.CostEstimate(
            flops=4 * rows * lanes,
            transcendentals=rows,
            bytes_accessed=rows * lanes * itemsize),
    )(x_rows, sb)

    return pl.pallas_call(
        functools.partial(_adain_apply_kernel,
                          ep_dtype=_epilogue_dtype(x_rows.dtype)),
        out_shape=jax.ShapeDtypeStruct((rows, lanes), x_rows.dtype),
        grid_spec=pltpu.PrefetchScalarGridSpec(
            num_scalar_prefetch=0,
            grid=(n_rb, n_ch),
            in_specs=[
                pl.BlockSpec((tr, t_hw), lambda i, j: (i, j)),
                pl.BlockSpec((tr, 2), lambda i, j: (i, 0)),
            ],
            out_specs=pl.BlockSpec((tr, t_hw), lambda i, j: (i, j)),
        ),
        compiler_params=pltpu.CompilerParams(
            dimension_semantics=("parallel", "parallel"),
            vmem_limit_bytes=limit,
        ),
        cost_estimate=pl.CostEstimate(
            flops=2 * rows * lanes,
            transcendentals=0,
            bytes_accessed=2 * rows * lanes * itemsize),
    )(x_rows, stats)


# --------------------------------- wrapper -----------------------------------

def _adain_rows(x_rows, gamma, beta, *, eps, force_lane_chunk=None):
    rows, hw = x_rows.shape
    itemsize = jnp.dtype(x_rows.dtype).itemsize
    sub = max(8, 32 // itemsize)
    limit = _vmem_limit_bytes()
    max_block_elems = max(sub * 128, int(limit * 0.7) // (4 * itemsize + 8))

    # One combined per-row parameter input: halves per-step DMA descriptors.
    sb = jnp.stack([gamma.astype(jnp.float32), beta.astype(jnp.float32)], axis=-1)

    hw128 = _round_up(hw, 128)
    if force_lane_chunk is None and min(rows, sub) * hw128 <= max_block_elems:
        # Fused single-launch path (lane-dense: pad H*W to a multiple of 128).
        xp = x_rows if hw128 == hw else jnp.pad(x_rows, ((0, 0), (0, hw128 - hw)))
        out = _adain_fused(xp, sb, eps=eps, hw_valid=hw)
    else:
        # H*W too large for a full-row block (or chunking forced for testing):
        # tile lanes; zero-padding keeps the chunked sums exact.
        if force_lane_chunk is not None:
            t_hw = max(128, _round_up(int(force_lane_chunk), 128))
        else:
            t_hw = max(128, (max_block_elems // min(rows, sub)) // 128 * 128)
            t_hw = min(t_hw, hw128)
        lanes = _round_up(hw, t_hw)
        xp = x_rows if lanes == hw else jnp.pad(x_rows, ((0, 0), (0, lanes - hw)))
        out = _adain_chunked(xp, sb, eps=eps, hw_valid=hw, t_hw=t_hw)

    return out[:, :hw] if out.shape[1] != hw else out


def adaptive_instance_norm_2d(x, weight, bias, *, eps=1e-5, force_lane_chunk=None):
    """AdaIN forward. x: (B, C, H, W); weight, bias: (B*C,) per-instance affine."""
    B, C, H, W = x.shape
    rows, hw = B * C, H * W
    # TODO(synk): input_output_aliases could donate x when the caller allows it;
    # left out here since the example inputs are not donated.
    out = _adain_rows(x.reshape(rows, hw),
                      weight.reshape(rows), bias.reshape(rows),
                      eps=eps, force_lane_chunk=force_lane_chunk)
    return out.reshape(B, C, H, W)


# -------------------------------- reference ----------------------------------

def _reference(x, weight, bias, eps):
    B, C, _, _ = x.shape
    xf = x.astype(jnp.float32)
    mean = xf.mean(axis=(2, 3), keepdims=True)
    var = ((xf - mean) ** 2).mean(axis=(2, 3), keepdims=True)   # biased variance
    y = (xf - mean) * lax.rsqrt(var + eps)
    return (y * weight.astype(jnp.float32).reshape(B, C, 1, 1)
            + bias.astype(jnp.float32).reshape(B, C, 1, 1))


# ----------------------------------- main -------------------------------------

if __name__ == "__main__":
    eps = 1e-5
    key = jax.random.PRNGKey(0)
    kx, kw, kb = jax.random.split(key, 3)

    def run_case(shape, dtype, force_lane_chunk, atol, rtol):
        B, C, H, W = shape
        x = jax.random.normal(kx, shape, jnp.float32)
        # In MUNIT, weight/bias come from a style MLP, one value per (batch, channel).
        w = jax.random.normal(kw, (B * C,), jnp.float32) * 0.5 + 1.0
        b = jax.random.normal(kb, (B * C,), jnp.float32) * 0.5
        xd = x.astype(dtype)
        fwd = jax.jit(functools.partial(adaptive_instance_norm_2d, eps=eps,
                                        force_lane_chunk=force_lane_chunk))
        out = jax.block_until_ready(fwd(xd, w, b))
        ref = _reference(xd, w, b, eps)
        assert out.shape == shape, (out.shape, shape)
        assert out.dtype == jnp.dtype(dtype), out.dtype
        out_f = out.astype(jnp.float32)
        assert bool(jnp.all(jnp.isfinite(out_f)))
        err = float(jnp.max(jnp.abs(out_f - ref)))
        assert bool(jnp.allclose(out_f, ref, atol=atol, rtol=rtol)), (shape, dtype, err)

    # Primary case: fused single-launch path.
    run_case((2, 4, 16, 16), jnp.float32, None, 1e-4, 1e-4)
    # Non-multiple-of-128 H*W (lane padding + in-kernel stat mask) and rows < 8.
    run_case((1, 3, 14, 14), jnp.float32, None, 1e-4, 1e-4)
    # Large-H*W fallback exercised via a forced 128-lane chunk (stats + apply kernels).
    run_case((2, 4, 16, 16), jnp.float32, 128, 1e-4, 1e-4)
    # bf16 input: f32 statistics, packed bf16 scale-and-shift epilogue on v6e/v7x.
    run_case((2, 4, 16, 16), jnp.bfloat16, None, 1e-1, 1e-1)

    # NOTE: running_mean/running_var momentum updates are intentionally omitted —
    # the PyTorch module only updates .repeat(b) copies, so its buffers never change.
    print("KERNEL_OK")
</pallas_src>

<mosaic_0001>
module attributes {stable_mosaic.version = 11 : i64} {
  func.func @_adain_fused_kernel(%arg0: i32, %arg1: memref<8x256xf32, #tpu.memory_space<vmem>>, %arg2: memref<8x2xf32, #tpu.memory_space<vmem>>, %arg3: memref<8x256xf32, #tpu.memory_space<vmem>>) attributes {dimension_semantics = [#tpu.dimension_semantics<parallel>], iteration_bounds = array<i64: 1>, scalar_prefetch = 0 : i64, scratch_operands = 0 : i64, tpu.core_type = #tpu.core_type<tc>, window_params = [{transform_indices = @transform_0, window_bounds = array<i64: 8, 256>}, {transform_indices = @transform_1, window_bounds = array<i64: 8, 2>}, {transform_indices = @transform_2, window_bounds = array<i64: 8, 256>}]} {
    %c0 = arith.constant 0 : index
    %c0_0 = arith.constant 0 : index
    %0 = vector.load %arg1[%c0, %c0_0] : memref<8x256xf32, #tpu.memory_space<vmem>>, vector<8x256xf32>
    %cst = arith.constant dense<0.000000e+00> : vector<8xf32>
    %1 = vector.multi_reduction <add>, %0, %cst [1] : vector<8x256xf32> to vector<8xf32>
    %2 = vector.shape_cast %1 : vector<8xf32> to vector<8x1xf32>
    %cst_1 = arith.constant 3.906250e-03 : f32
    %3 = vector.broadcast %cst_1 : f32 to vector<8x1xf32>
    %4 = arith.mulf %2, %3 : vector<8x1xf32>
    %5 = vector.broadcast %4 : vector<8x1xf32> to vector<8x256xf32>
    %6 = arith.subf %0, %5 : vector<8x256xf32>
    %7 = arith.mulf %6, %6 : vector<8x256xf32>
    %cst_2 = arith.constant dense<0.000000e+00> : vector<8xf32>
    %8 = vector.multi_reduction <add>, %7, %cst_2 [1] : vector<8x256xf32> to vector<8xf32>
    %9 = vector.shape_cast %8 : vector<8xf32> to vector<8x1xf32>
    %cst_3 = arith.constant 3.906250e-03 : f32
    %10 = vector.broadcast %cst_3 : f32 to vector<8x1xf32>
    %11 = arith.mulf %9, %10 : vector<8x1xf32>
    %cst_4 = arith.constant 9.99999974E-6 : f32
    %12 = vector.broadcast %cst_4 : f32 to vector<8x1xf32>
    %13 = arith.addf %11, %12 : vector<8x1xf32>
    %14 = math.rsqrt %13 : vector<8x1xf32>
    %c0_5 = arith.constant 0 : index
    %c0_6 = arith.constant 0 : index
    %15 = vector.load %arg2[%c0_5, %c0_6] : memref<8x2xf32, #tpu.memory_space<vmem>>, vector<8x1xf32>
    %c0_7 = arith.constant 0 : index
    %c1 = arith.constant 1 : index
    %16 = vector.load %arg2[%c0_7, %c1] : memref<8x2xf32, #tpu.memory_space<vmem>>, vector<8x1xf32>
    %17 = arith.mulf %14, %15 : vector<8x1xf32>
    %18 = arith.mulf %4, %17 : vector<8x1xf32>
    %19 = arith.subf %16, %18 : vector<8x1xf32>
    %20 = vector.broadcast %17 : vector<8x1xf32> to vector<8x256xf32>
    %21 = arith.mulf %0, %20 : vector<8x256xf32>
    %22 = vector.broadcast %19 : vector<8x1xf32> to vector<8x256xf32>
    %23 = arith.addf %21, %22 : vector<8x256xf32>
    %c0_8 = arith.constant 0 : index
    %c0_9 = arith.constant 0 : index
    %24 = vector.load %arg3[%c0_8, %c0_9] : memref<8x256xf32, #tpu.memory_space<vmem>>, vector<8x256xf32>
    tpu.vector_store %arg3[%c0_8, %c0_9], %23 {strides = array<i32>} : memref<8x256xf32, #tpu.memory_space<vmem>>, vector<8x256xf32>,
    return
  }
  func.func @transform_0(%arg0: i32) -> (i32, i32) {
    %c0_i32 = arith.constant 0 : i32
    %c0_i32_0 = arith.constant 0 : i32
    return %arg0, %c0_i32 : i32, i32
  }
  func.func @transform_1(%arg0: i32) -> (i32, i32) {
    %c0_i32 = arith.constant 0 : i32
    %c0_i32_0 = arith.constant 0 : i32
    return %arg0, %c0_i32 : i32, i32
  }
  func.func @transform_2(%arg0: i32) -> (i32, i32) {
    %c0_i32 = arith.constant 0 : i32
    %c0_i32_0 = arith.constant 0 : i32
    return %arg0, %c0_i32 : i32, i32
  }
}

</mosaic_0001>

<llo_original>
// kernel: adaptive_instance_norm_2d.1
$region0: #{adaptive_instance_norm_2d.1}
  #allocation0 [shape = 'u32[]', space=smem, size = 0x4, offset = 0x4, fixed_abs, tag = 'smem constant byte address 0x4 - core index']
  #allocation1 [shape = 'u32[144,128]{1,0:T(1,128)}', space=vmem, size = 0x12000, scoped, tag = 'internal scratch']
  %s0 = inlined_call_operand.vmem [shape: f32[8,256], index: 0, kind: input, shape index: {}]
  %s1 = inlined_call_operand.vmem [shape: f32[8,2], index: 1, kind: input, shape index: {}]
  %s2 = inlined_call_operand.vmem [shape: f32[8,256], index: 2, kind: output, shape index: {}]
  %s3 = sld [smem:[#allocation0]]
  $region18: #{adaptive_instance_norm_2d.1} parent=0
    _
  %s5 = ssub.s32 1, %s3
  %s6 = scalar_select 0, %s5, %s3
  // Predicated region
  $region2: #{adaptive_instance_norm_2d.1} parent=0 // pred_check
    _
  $region3: #{adaptive_instance_norm_2d.1} parent=0 // pred_check_branch
    %8 = sbr.rel (0) target = $region5
  $region4: #{adaptive_instance_norm_2d.1} parent=0 // pred_region
    _
  $region5: #{adaptive_instance_norm_2d.1} parent=0 // pred_fallthru
    _
  // Predicated region
  $region6: #{adaptive_instance_norm_2d.1} parent=0 // pred_check
    _
  $region7: #{adaptive_instance_norm_2d.1} parent=0 // pred_check_branch
    %10 = sbr.rel (0) target = $region9
  $region8: #{adaptive_instance_norm_2d.1} parent=0 // pred_region
    _
  $region9: #{adaptive_instance_norm_2d.1} parent=0 // pred_fallthru
    _
  %v11 = vld [vmem:[%s0] sm:$0xff]
  %v12 = vld [vmem:[%s0 + $0x8] sm:$0xff]
  %v13 = vadd.f32 %v11, %v12
  %14 = vadd.xlane.f32.xlu0 %v13
  %v15 = vpop.xlane.xlu0 %14
  %v16 = vmul.f32 %v15, 0.00390625
  %v17 = vsub.f32 %v11, %v16
  %v18 = vsub.f32 %v12, %v16
  %v19 = vmul.f32 %v17, %v17
  %v20 = vmul.f32 %v18, %v18
  %v21 = vadd.f32 %v19, %v20
  %22 = vadd.xlane.f32.xlu0 %v21
  %v23 = vpop.xlane.xlu0 %22
  %v24 = vmul.f32 %v23, 0.00390625
  %v25 = vadd.f32 %v24, 1e-05
  %v26 = vrsqrt.pop %v25
  %v27 = vld [vmem:[%s1] sm:$0xff]
  %v28 = vmul.f32 %v26, %v27
  %v29 = vmul.f32 %v16, %v28
  %31 = vrot.lane.b32.xlu0 %v29, 1
  %v32 = vpop.permute.xlu0 %31
  %v34 = vsub.f32 %v27, %v32
  %36 = vset.pattern.permute.xlu0 0
  %37 = vperm.xlu0 %36, %v28
  %v38 = vpop.permute.xlu0 %37
  %v40 = vmul.f32 %v11, %v38
  %v41 = vmul.f32 %v12, %v38
  %43 = vset.pattern.permute.xlu0 1
  %44 = vperm.xlu0 %43, %v34
  %v45 = vpop.permute.xlu0 %44
  %v47 = vadd.f32 %v40, %v45
  %v48 = vadd.f32 %v41, %v45
  %49 = vst [vmem:[%s2] sm:$0xff] %v47
  %50 = vst [vmem:[%s2 + $0x8] sm:$0xff] %v48
  // Predicated region
  $region10: #{adaptive_instance_norm_2d.1} parent=0 // pred_check
    _
  $region11: #{adaptive_instance_norm_2d.1} parent=0 // pred_check_branch
    %52 = sbr.rel (0) target = $region13
  $region12: #{adaptive_instance_norm_2d.1} parent=0 // pred_region
    _
  $region13: #{adaptive_instance_norm_2d.1} parent=0 // pred_fallthru
    _
  // Predicated region
  $region14: #{adaptive_instance_norm_2d.1} parent=0 // pred_check
    _
  $region15: #{adaptive_instance_norm_2d.1} parent=0 // pred_check_branch
    %54 = sbr.rel (0) target = $region17
  $region16: #{adaptive_instance_norm_2d.1} parent=0 // pred_region
    _
  $region17: #{adaptive_instance_norm_2d.1} parent=0 // pred_fallthru
    _

</llo_original>
